<compile_context>
chip_gen: v5e
topology: v5e:2x2
jax: 0.10.0
libtpu: 0.0.40
codegen_flags: <defaults>
</compile_context>

<pallas_src>
import functools

import jax
import jax.numpy as jnp
from jax.experimental import pallas as pl
from jax.experimental.pallas import tpu as pltpu


def obs_encoder_kernel(x_ref, m_ref, w1_ref, b1_ref, w2_ref, b2_ref, enc_ref, *, t_steps):
    # x_ref: (tile_bn*T, D) bf16/f32    m_ref: (tile_bn*T, 1) in {0,1}
    rows = x_ref.shape[0]
    tile_bn = rows // t_steps

    x = x_ref[...].astype(jnp.float32)
    valid = m_ref[...].astype(jnp.float32) > 0.5          # (rows, 1), lane-broadcasts below

    # obs_input.masked_fill(~obs_mask[..., None], 0.0)  -- where, not multiply (NaN-safe)
    x = jnp.where(valid, x, 0.0)

    # MLP([D, H//2, H], ret_before_act=True): Linear -> ReLU -> Linear, as tall-M 2D matmuls.
    # TODO(synk): prosim's MLP may optionally insert a norm layer; plain Linear/ReLU assumed.
    h1 = jnp.dot(x, w1_ref[...], preferred_element_type=jnp.float32) + b1_ref[...]
    h1 = jnp.maximum(h1, 0.0)
    h2 = jnp.dot(h1, w2_ref[...], preferred_element_type=jnp.float32) + b2_ref[...]

    # _pool_hist (pool_func='max'): masked_fill(~mask[..., None], -1e9), max over time.
    h2 = jnp.where(valid, h2, jnp.float32(-1e9))
    h2 = h2.reshape(tile_bn, t_steps, h2.shape[-1])
    enc_ref[...] = jnp.max(h2, axis=1)


def mlp_obv_encoder(obs_input, obs_mask_full, params, *, tile_bn=512,
                    input_dtype=jnp.bfloat16):
    """obs_input: (B, N, T, D); obs_mask_full: (B, N, T, Dm) bool."""
    B, N, T, D = obs_input.shape
    H1 = params['w1'].shape[1]
    H = params['w2'].shape[1]

    # Glue: mask.all(dim=-1) and obs_mask.any(dim=-1); flatten (B, N) -> B*N rows.
    obs_mask = jnp.all(obs_mask_full, axis=-1)                       # (B, N, T) bool
    out_mask = jnp.any(obs_mask, axis=-1)                            # (B, N)    bool

    BN = B * N
    # Tile sizing: multiple of 8 agents (sublane alignment of the output block),
    # capped to the (padded) problem size.
    tile_bn = max(8, min(tile_bn, pl.cdiv(BN, 8) * 8))
    tile_bn = (tile_bn // 8) * 8
    BN_pad = pl.cdiv(BN, tile_bn) * tile_bn
    pad = BN_pad - BN

    x = obs_input.reshape(BN, T, D)
    m = obs_mask.reshape(BN, T)
    if pad:
        # Pad rows are fully masked -> they pool to -1e9 and are sliced off below.
        x = jnp.concatenate([x, jnp.zeros((pad, T, D), x.dtype)], axis=0)
        m = jnp.concatenate([m, jnp.zeros((pad, T), m.dtype)], axis=0)

    # Fold T into rows: one tall-M matmul per tile; mask as a (rows, 1) lane-splat column.
    x2 = x.reshape(BN_pad * T, D).astype(input_dtype)
    m2 = m.reshape(BN_pad * T, 1).astype(input_dtype)

    rows_per_tile = tile_bn * T
    grid = (BN_pad // tile_bn,)

    kernel = functools.partial(obs_encoder_kernel, t_steps=T)

    enc = pl.pallas_call(
        kernel,
        out_shape=jax.ShapeDtypeStruct((BN_pad, H), jnp.float32),
        grid_spec=pltpu.PrefetchScalarGridSpec(
            num_scalar_prefetch=0,
            grid=grid,
            in_specs=[
                pl.BlockSpec((rows_per_tile, D), lambda i: (i, 0)),   # obs input tile
                pl.BlockSpec((rows_per_tile, 1), lambda i: (i, 0)),   # time-validity mask
                pl.BlockSpec((D, H1), lambda i: (0, 0)),              # W1 (resident)
                pl.BlockSpec((1, H1), lambda i: (0, 0)),              # b1
                pl.BlockSpec((H1, H), lambda i: (0, 0)),              # W2
                pl.BlockSpec((1, H), lambda i: (0, 0)),               # b2
            ],
            out_specs=pl.BlockSpec((tile_bn, H), lambda i: (i, 0)),
        ),
        compiler_params=pltpu.CompilerParams(
            dimension_semantics=("parallel",),
            vmem_limit_bytes=48 * 1024 * 1024,   # fits v7x's smaller per-TC VMEM
        ),
    )(x2, m2, params['w1'], params['b1'], params['w2'], params['b2'])

    hist_enc = enc[:BN].reshape(B, N, H)
    return hist_enc, out_mask


def reference_forward(obs_input, obs_mask_full, params):
    """Pure-JAX reference mirroring the PyTorch forward (pool_func='max')."""
    obs_mask = jnp.all(obs_mask_full, axis=-1)                       # (B, N, T)
    x = jnp.where(obs_mask[..., None], obs_input, 0.0)
    h1 = jnp.maximum(x @ params['w1'] + params['b1'][0], 0.0)
    h2 = h1 @ params['w2'] + params['b2'][0]
    h2 = jnp.where(obs_mask[..., None], h2, -1e9)
    hist_enc = jnp.max(h2, axis=2)
    out_mask = jnp.any(obs_mask, axis=-1)
    return hist_enc, out_mask


def init_params(key, in_dim, hidden_dim):
    h1 = hidden_dim // 2
    k1, k2, k3, k4 = jax.random.split(key, 4)
    # Weights stored as (in, out) == transpose of torch.nn.Linear's (out, in).
    return {
        'w1': 0.1 * jax.random.normal(k1, (in_dim, h1), jnp.float32),
        'b1': 0.1 * jax.random.normal(k2, (1, h1), jnp.float32),
        'w2': 0.1 * jax.random.normal(k3, (h1, hidden_dim), jnp.float32),
        'b2': 0.1 * jax.random.normal(k4, (1, hidden_dim), jnp.float32),
    }


if __name__ == "__main__":
    # Small shapes consistent with the module:
    #   B=2 scenes, N=8 agents, T=8 history steps, D=16 history feature dim
    #   (11 base elements + extend + agent-type flags, padded), HIDDEN_DIM=32.
    B, N, T, D, HIDDEN = 2, 8, 8, 16, 32

    key = jax.random.PRNGKey(0)
    k_in, k_mask, k_param = jax.random.split(key, 3)

    obs_input = jax.random.normal(k_in, (B, N, T, D), jnp.float32)
    # Per-(agent, step, feature) validity; .all(-1) inside the model collapses it.
    obs_mask_full = jax.random.uniform(k_mask, (B, N, T, D)) < 0.9
    # One agent fully invalid (and poisoned with NaN to exercise masked_fill semantics),
    # one agent fully valid.
    obs_mask_full = obs_mask_full.at[0, 0].set(False)
    obs_input = obs_input.at[0, 0].set(jnp.nan)
    obs_mask_full = obs_mask_full.at[1, 1].set(True)

    params = init_params(k_param, D, HIDDEN)

    hist_enc, out_mask = mlp_obv_encoder(obs_input, obs_mask_full, params)
    jax.block_until_ready(hist_enc)
    jax.block_until_ready(out_mask)

    ref_enc, ref_mask = reference_forward(obs_input, obs_mask_full, params)
    assert hist_enc.shape == (B, N, HIDDEN) and out_mask.shape == (B, N)
    assert not bool(jnp.any(jnp.isnan(hist_enc)))
    # bf16 on the HBM input stream -> slightly looser tolerance than pure f32.
    assert jnp.allclose(hist_enc, ref_enc, rtol=3e-2, atol=3e-2)
    assert bool(jnp.all(out_mask == ref_mask))

    print("KERNEL_OK")
</pallas_src>

<mosaic_0001>
module attributes {stable_mosaic.version = 11 : i64} {
  func.func @obs_encoder_kernel(%arg0: i32, %arg1: memref<128x16xbf16, #tpu.memory_space<vmem>>, %arg2: memref<128x1xbf16, #tpu.memory_space<vmem>>, %arg3: memref<16x16xf32, #tpu.memory_space<vmem>>, %arg4: memref<1x16xf32, #tpu.memory_space<vmem>>, %arg5: memref<16x32xf32, #tpu.memory_space<vmem>>, %arg6: memref<1x32xf32, #tpu.memory_space<vmem>>, %arg7: memref<16x32xf32, #tpu.memory_space<vmem>>) attributes {dimension_semantics = [#tpu.dimension_semantics<parallel>], iteration_bounds = array<i64: 1>, scalar_prefetch = 0 : i64, scratch_operands = 0 : i64, tpu.core_type = #tpu.core_type<tc>, window_params = [{transform_indices = @transform_0, window_bounds = array<i64: 128, 16>}, {transform_indices = @transform_1, window_bounds = array<i64: 128, 1>}, {pipeline_mode = #tpu.pipeline_mode<synchronous>, transform_indices = @transform_2, window_bounds = array<i64: 16, 16>}, {pipeline_mode = #tpu.pipeline_mode<synchronous>, transform_indices = @transform_3, window_bounds = array<i64: 1, 16>}, {pipeline_mode = #tpu.pipeline_mode<synchronous>, transform_indices = @transform_4, window_bounds = array<i64: 16, 32>}, {pipeline_mode = #tpu.pipeline_mode<synchronous>, transform_indices = @transform_5, window_bounds = array<i64: 1, 32>}, {transform_indices = @transform_6, window_bounds = array<i64: 16, 32>}]} {
    %c0 = arith.constant 0 : index
    %c0_0 = arith.constant 0 : index
    %0 = vector.load %arg1[%c0, %c0_0] : memref<128x16xbf16, #tpu.memory_space<vmem>>, vector<128x16xbf16>
    %1 = arith.extf %0 : vector<128x16xbf16> to vector<128x16xf32>
    %c0_1 = arith.constant 0 : index
    %c0_2 = arith.constant 0 : index
    %2 = vector.load %arg2[%c0_1, %c0_2] : memref<128x1xbf16, #tpu.memory_space<vmem>>, vector<128x1xbf16>
    %3 = arith.extf %2 : vector<128x1xbf16> to vector<128x1xf32>
    %cst = arith.constant 5.000000e-01 : f32
    %4 = vector.broadcast %cst : f32 to vector<128x1xf32>
    %5 = arith.cmpf ogt, %3, %4 : vector<128x1xf32>
    %cst_3 = arith.constant 0.000000e+00 : f32
    %6 = vector.shape_cast %5 : vector<128x1xi1> to vector<128x1xi1>
    %7 = vector.broadcast %6 : vector<128x1xi1> to vector<128x16xi1>
    %8 = vector.broadcast %cst_3 : f32 to vector<128x16xf32>
    %9 = arith.select %7, %1, %8 : vector<128x16xi1>, vector<128x16xf32>
    %c0_4 = arith.constant 0 : index
    %c0_5 = arith.constant 0 : index
    %10 = vector.load %arg3[%c0_4, %c0_5] : memref<16x16xf32, #tpu.memory_space<vmem>>, vector<16x16xf32>
    %cst_6 = arith.constant dense<0.000000e+00> : vector<128x16xf32>
    %11 = tpu.matmul %9, %10, %cst_6 {dimension_numbers = #tpu.dot_dimension_numbers<[1], [0], [0], [1], [0, 0, 1, 1], [], []>} : vector<128x16xf32>, vector<16x16xf32>, vector<128x16xf32> -> vector<128x16xf32>
    %c0_7 = arith.constant 0 : index
    %c0_8 = arith.constant 0 : index
    %12 = vector.load %arg4[%c0_7, %c0_8] : memref<1x16xf32, #tpu.memory_space<vmem>>, vector<1x16xf32>
    %13 = vector.broadcast %12 : vector<1x16xf32> to vector<128x16xf32>
    %14 = arith.addf %11, %13 : vector<128x16xf32>
    %cst_9 = arith.constant 0.000000e+00 : f32
    %15 = vector.broadcast %cst_9 : f32 to vector<128x16xf32>
    %16 = arith.maximumf %14, %15 : vector<128x16xf32>
    %c0_10 = arith.constant 0 : index
    %c0_11 = arith.constant 0 : index
    %17 = vector.load %arg5[%c0_10, %c0_11] : memref<16x32xf32, #tpu.memory_space<vmem>>, vector<16x32xf32>
    %cst_12 = arith.constant dense<0.000000e+00> : vector<128x32xf32>
    %18 = tpu.matmul %16, %17, %cst_12 {dimension_numbers = #tpu.dot_dimension_numbers<[1], [0], [0], [1], [0, 0, 1, 1], [], []>} : vector<128x16xf32>, vector<16x32xf32>, vector<128x32xf32> -> vector<128x32xf32>
    %c0_13 = arith.constant 0 : index
    %c0_14 = arith.constant 0 : index
    %19 = vector.load %arg6[%c0_13, %c0_14] : memref<1x32xf32, #tpu.memory_space<vmem>>, vector<1x32xf32>
    %20 = vector.broadcast %19 : vector<1x32xf32> to vector<128x32xf32>
    %21 = arith.addf %18, %20 : vector<128x32xf32>
    %cst_15 = arith.constant -1.000000e+09 : f32
    %22 = vector.shape_cast %5 : vector<128x1xi1> to vector<128x1xi1>
    %23 = vector.broadcast %22 : vector<128x1xi1> to vector<128x32xi1>
    %24 = vector.broadcast %cst_15 : f32 to vector<128x32xf32>
    %25 = arith.select %23, %21, %24 : vector<128x32xi1>, vector<128x32xf32>
    %26 = vector.shape_cast %25 : vector<128x32xf32> to vector<16x8x32xf32>
    %cst_16 = arith.constant dense<0xFF800000> : vector<16x32xf32>
    %27 = vector.multi_reduction <maximumf>, %26, %cst_16 [1] : vector<16x8x32xf32> to vector<16x32xf32>
    %c0_17 = arith.constant 0 : index
    %c0_18 = arith.constant 0 : index
    %28 = vector.load %arg7[%c0_17, %c0_18] : memref<16x32xf32, #tpu.memory_space<vmem>>, vector<16x32xf32>
    tpu.vector_store %arg7[%c0_17, %c0_18], %27 {strides = array<i32>} : memref<16x32xf32, #tpu.memory_space<vmem>>, vector<16x32xf32>,
    return
  }
  func.func @transform_0(%arg0: i32) -> (i32, i32) {
    %c0_i32 = arith.constant 0 : i32
    %c0_i32_0 = arith.constant 0 : i32
    return %arg0, %c0_i32 : i32, i32
  }
  func.func @transform_1(%arg0: i32) -> (i32, i32) {
    %c0_i32 = arith.constant 0 : i32
    %c0_i32_0 = arith.constant 0 : i32
    return %arg0, %c0_i32 : i32, i32
  }
  func.func @transform_2(%arg0: i32) -> (i32, i32) {
    %c0_i32 = arith.constant 0 : i32
    %c0_i32_0 = arith.constant 0 : i32
    %c0_i32_1 = arith.constant 0 : i32
    return %c0_i32, %c0_i32_0 : i32, i32
  }
  func.func @transform_3(%arg0: i32) -> (i32, i32) {
    %c0_i32 = arith.constant 0 : i32
    %c0_i32_0 = arith.constant 0 : i32
    %c0_i32_1 = arith.constant 0 : i32
    return %c0_i32, %c0_i32_0 : i32, i32
  }
  func.func @transform_4(%arg0: i32) -> (i32, i32) {
    %c0_i32 = arith.constant 0 : i32
    %c0_i32_0 = arith.constant 0 : i32
    %c0_i32_1 = arith.constant 0 : i32
    return %c0_i32, %c0_i32_0 : i32, i32
  }
  func.func @transform_5(%arg0: i32) -> (i32, i32) {
    %c0_i32 = arith.constant 0 : i32
    %c0_i32_0 = arith.constant 0 : i32
    %c0_i32_1 = arith.constant 0 : i32
    return %c0_i32, %c0_i32_0 : i32, i32
  }
  func.func @transform_6(%arg0: i32) -> (i32, i32) {
    %c0_i32 = arith.constant 0 : i32
    %c0_i32_0 = arith.constant 0 : i32
    return %arg0, %c0_i32 : i32, i32
  }
}

</mosaic_0001>

<llo_original>
// kernel: tpu_custom_call.1
$region0: #{tpu_custom_call.1}
  #allocation0 [shape = 'u32[]', space=smem, size = 0x4, offset = 0x4, fixed_abs, tag = 'smem constant byte address 0x4 - core index']
  #allocation1 [shape = 'u32[72,128]{1,0:T(1,128)}', space=vmem, size = 0x9000, scoped, tag = 'internal scratch']
  %s0 = inlined_call_operand.vmem [shape: bf16[128,16], index: 0, kind: input, shape index: {}]
  %s1 = inlined_call_operand.vmem [shape: bf16[128,1], index: 1, kind: input, shape index: {}]
  %s2 = inlined_call_operand.vmem [shape: f32[16,16], index: 2, kind: input, shape index: {}]
  %s3 = inlined_call_operand.vmem [shape: f32[1,16], index: 3, kind: input, shape index: {}]
  %s4 = inlined_call_operand.vmem [shape: f32[16,32], index: 4, kind: input, shape index: {}]
  %s5 = inlined_call_operand.vmem [shape: f32[1,32], index: 5, kind: input, shape index: {}]
  %s6 = inlined_call_operand.hbm [shape: f32[16,32], index: 6, kind: output, shape index: {}]
  %s7 = sld [smem:[#allocation0]]
  $region34: #{tpu_custom_call.1} parent=0
    _
  %s9 = ssub.s32 1, %s7
  %s10 = scalar_select 0, %s9, %s7
  $region1: #{tpu_custom_call.1} parent=0
    #allocation2 [shape = 'u8[8192]{0}', space=vmem, size = 0x2000, scoped, tag = 'output window, operand 0, single buffered']
    #allocation3 [shape = 's32[1]{0}', space=sflag, size = 0x4, scoped, tag = 'scoped memory for tpu_custom_call.1']
    %11 = vsyncpa [#allocation3], 0
    // Predicated region
    $region2: #{tpu_custom_call.1} parent=1 // pred_check
      _
    $region3: #{tpu_custom_call.1} parent=1 // pred_check_branch
      %13 = sbr.rel (0) target = $region5
    $region4: #{tpu_custom_call.1} parent=1 // pred_region
      _
    $region5: #{tpu_custom_call.1} parent=1 // pred_fallthru
      _
    // Predicated region
    $region6: #{tpu_custom_call.1} parent=1 // pred_check
      _
    $region7: #{tpu_custom_call.1} parent=1 // pred_check_branch
      %15 = sbr.rel (0) target = $region9
    $region8: #{tpu_custom_call.1} parent=1 // pred_region
      _
    $region9: #{tpu_custom_call.1} parent=1 // pred_fallthru
      _
    // Predicated region
    $region10: #{tpu_custom_call.1} parent=1 // pred_check
      _
    $region11: #{tpu_custom_call.1} parent=1 // pred_check_branch
      %17 = sbr.rel (0) target = $region13
    $region12: #{tpu_custom_call.1} parent=1 // pred_region
      _
    $region13: #{tpu_custom_call.1} parent=1 // pred_fallthru
      _
    // Predicated region
    $region14: #{tpu_custom_call.1} parent=1 // pred_check
      _
    $region15: #{tpu_custom_call.1} parent=1 // pred_check_branch
      %19 = sbr.rel (0) target = $region17
    $region16: #{tpu_custom_call.1} parent=1 // pred_region
      _
    $region17: #{tpu_custom_call.1} parent=1 // pred_fallthru
      _
    // Predicated region
    $region18: #{tpu_custom_call.1} parent=1 // pred_check
      _
    $region19: #{tpu_custom_call.1} parent=1 // pred_check_branch
      %21 = sbr.rel (0) target = $region21
    $region20: #{tpu_custom_call.1} parent=1 // pred_region
      _
    $region21: #{tpu_custom_call.1} parent=1 // pred_fallthru
      _
    // Predicated region
    $region22: #{tpu_custom_call.1} parent=1 // pred_check
      _
    $region23: #{tpu_custom_call.1} parent=1 // pred_check_branch
      %23 = sbr.rel (0) target = $region25
    $region24: #{tpu_custom_call.1} parent=1 // pred_region
      _
    $region25: #{tpu_custom_call.1} parent=1 // pred_fallthru
      _
    %v24 = vld [vmem:[%s0] sm:$0xf]
    %v25 = vld [vmem:[%s0 + $0x4] sm:$0xf]
    %v26 = vld [vmem:[%s0 + $0x8] sm:$0xf]
    %v27 = vld [vmem:[%s0 + $0xc] sm:$0xf]
    %v28 = vld [vmem:[%s0 + $0x10] sm:$0xf]
    %v29 = vld [vmem:[%s0 + $0x14] sm:$0xf]
    %v30 = vld [vmem:[%s0 + $0x18] sm:$0xf]
    %v31 = vld [vmem:[%s0 + $0x1c] sm:$0xf]
    %v32 = vld [vmem:[%s0 + $0x20] sm:$0xf]
    %v33 = vld [vmem:[%s0 + $0x24] sm:$0xf]
    %v34 = vld [vmem:[%s0 + $0x28] sm:$0xf]
    %v35 = vld [vmem:[%s0 + $0x2c] sm:$0xf]
    %v36 = vld [vmem:[%s0 + $0x30] sm:$0xf]
    %v37 = vld [vmem:[%s0 + $0x34] sm:$0xf]
    %v38 = vld [vmem:[%s0 + $0x38] sm:$0xf]
    %v39 = vld [vmem:[%s0 + $0x3c] sm:$0xf]
    %v40 = vunpack.c.l.bf16 %v24
    %v41 = vunpack.c.l.bf16 %v25
    %v42 = vunpack.c.l.bf16 %v26
    %v43 = vunpack.c.l.bf16 %v27
    %v44 = vunpack.c.l.bf16 %v28
    %v45 = vunpack.c.l.bf16 %v29
    %v46 = vunpack.c.l.bf16 %v30
    %v47 = vunpack.c.l.bf16 %v31
    %v48 = vunpack.c.l.bf16 %v32
    %v49 = vunpack.c.l.bf16 %v33
    %v50 = vunpack.c.l.bf16 %v34
    %v51 = vunpack.c.l.bf16 %v35
    %v52 = vunpack.c.l.bf16 %v36
    %v53 = vunpack.c.l.bf16 %v37
    %v54 = vunpack.c.l.bf16 %v38
    %v55 = vunpack.c.l.bf16 %v39
    %v56 = vld [vmem:[%s1] sm:$0xf]
    %v57 = vld [vmem:[%s1 + $0x4] sm:$0xf]
    %v58 = vld [vmem:[%s1 + $0x8] sm:$0xf]
    %v59 = vld [vmem:[%s1 + $0xc] sm:$0xf]
    %v60 = vld [vmem:[%s1 + $0x10] sm:$0xf]
    %v61 = vld [vmem:[%s1 + $0x14] sm:$0xf]
    %v62 = vld [vmem:[%s1 + $0x18] sm:$0xf]
    %v63 = vld [vmem:[%s1 + $0x1c] sm:$0xf]
    %v64 = vld [vmem:[%s1 + $0x20] sm:$0xf]
    %v65 = vld [vmem:[%s1 + $0x24] sm:$0xf]
    %v66 = vld [vmem:[%s1 + $0x28] sm:$0xf]
    %v67 = vld [vmem:[%s1 + $0x2c] sm:$0xf]
    %v68 = vld [vmem:[%s1 + $0x30] sm:$0xf]
    %v69 = vld [vmem:[%s1 + $0x34] sm:$0xf]
    %v70 = vld [vmem:[%s1 + $0x38] sm:$0xf]
    %v71 = vld [vmem:[%s1 + $0x3c] sm:$0xf]
    %v72 = vunpack.c.l.bf16 %v56
    %v73 = vunpack.c.l.bf16 %v57
    %v74 = vunpack.c.l.bf16 %v58
    %v75 = vunpack.c.l.bf16 %v59
    %v76 = vunpack.c.l.bf16 %v60
    %v77 = vunpack.c.l.bf16 %v61
    %v78 = vunpack.c.l.bf16 %v62
    %v79 = vunpack.c.l.bf16 %v63
    %v80 = vunpack.c.l.bf16 %v64
    %v81 = vunpack.c.l.bf16 %v65
    %v82 = vunpack.c.l.bf16 %v66
    %v83 = vunpack.c.l.bf16 %v67
    %v84 = vunpack.c.l.bf16 %v68
    %v85 = vunpack.c.l.bf16 %v69
    %v86 = vunpack.c.l.bf16 %v70
    %v87 = vunpack.c.l.bf16 %v71
    %vm88 = vcmp.gt.f32.partialorder %v72, 0.5
    %vm89 = vcmp.gt.f32.partialorder %v73, 0.5
    %vm90 = vcmp.gt.f32.partialorder %v74, 0.5
    %vm91 = vcmp.gt.f32.partialorder %v75, 0.5
    %vm92 = vcmp.gt.f32.partialorder %v76, 0.5
    %vm93 = vcmp.gt.f32.partialorder %v77, 0.5
    %vm94 = vcmp.gt.f32.partialorder %v78, 0.5
    %vm95 = vcmp.gt.f32.partialorder %v79, 0.5
    %vm96 = vcmp.gt.f32.partialorder %v80, 0.5
    %vm97 = vcmp.gt.f32.partialorder %v81, 0.5
    %vm98 = vcmp.gt.f32.partialorder %v82, 0.5
    %vm99 = vcmp.gt.f32.partialorder %v83, 0.5
    %vm100 = vcmp.gt.f32.partialorder %v84, 0.5
    %vm101 = vcmp.gt.f32.partialorder %v85, 0.5
    %vm102 = vcmp.gt.f32.partialorder %v86, 0.5
    %vm103 = vcmp.gt.f32.partialorder %v87, 0.5
    %v104 = vsel %vm88, 1, 0
    %v105 = vsel %vm89, 1, 0
    %v106 = vsel %vm90, 1, 0
    %v107 = vsel %vm91, 1, 0
    %v108 = vsel %vm92, 1, 0
    %v109 = vsel %vm93, 1, 0
    %v110 = vsel %vm94, 1, 0
    %v111 = vsel %vm95, 1, 0
    %v112 = vsel %vm96, 1, 0
    %v113 = vsel %vm97, 1, 0
    %v114 = vsel %vm98, 1, 0
    %v115 = vsel %vm99, 1, 0
    %v116 = vsel %vm100, 1, 0
    %v117 = vsel %vm101, 1, 0
    %v118 = vsel %vm102, 1, 0
    %v119 = vsel %vm103, 1, 0
    %120 = vset.pattern.permute.xlu0 0
    %121 = vperm.xlu0 %120, %v104
    %v122 = vpop.permute.xlu0 %121
    %123 = vset.pattern.permute.xlu0 0
    %124 = vperm.xlu0 %123, %v105
    %v125 = vpop.permute.xlu0 %124
    %126 = vset.pattern.permute.xlu0 0
    %127 = vperm.xlu0 %126, %v106
    %v128 = vpop.permute.xlu0 %127
    %129 = vset.pattern.permute.xlu0 0
    %130 = vperm.xlu0 %129, %v107
    %v131 = vpop.permute.xlu0 %130
    %132 = vset.pattern.permute.xlu0 0
    %133 = vperm.xlu0 %132, %v108
    %v134 = vpop.permute.xlu0 %133
    %135 = vset.pattern.permute.xlu0 0
    %136 = vperm.xlu0 %135, %v109
    %v137 = vpop.permute.xlu0 %136
    %138 = vset.pattern.permute.xlu0 0
    %139 = vperm.xlu0 %138, %v110
    %v140 = vpop.permute.xlu0 %139
    %141 = vset.pattern.permute.xlu0 0
    %142 = vperm.xlu0 %141, %v111
    %v143 = vpop.permute.xlu0 %142
    %144 = vset.pattern.permute.xlu0 0
    %145 = vperm.xlu0 %144, %v112
    %v146 = vpop.permute.xlu0 %145
    %147 = vset.pattern.permute.xlu0 0
    %148 = vperm.xlu0 %147, %v113
    %v149 = vpop.permute.xlu0 %148
    %150 = vset.pattern.permute.xlu0 0
    %151 = vperm.xlu0 %150, %v114
    %v152 = vpop.permute.xlu0 %151
    %153 = vset.pattern.permute.xlu0 0
    %154 = vperm.xlu0 %153, %v115
    %v155 = vpop.permute.xlu0 %154
    %156 = vset.pattern.permute.xlu0 0
    %157 = vperm.xlu0 %156, %v116
    %v158 = vpop.permute.xlu0 %157
    %159 = vset.pattern.permute.xlu0 0
    %160 = vperm.xlu0 %159, %v117
    %v161 = vpop.permute.xlu0 %160
    %162 = vset.pattern.permute.xlu0 0
    %163 = vperm.xlu0 %162, %v118
    %v164 = vpop.permute.xlu0 %163
    %165 = vset.pattern.permute.xlu0 0
    %166 = vperm.xlu0 %165, %v119
    %v167 = vpop.permute.xlu0 %166
    %vm168 = vcmp.eq.s32.totalorder %v122, 1
    %vm169 = vcmp.eq.s32.totalorder %v125, 1
    %vm170 = vcmp.eq.s32.totalorder %v128, 1
    %vm171 = vcmp.eq.s32.totalorder %v131, 1
    %vm172 = vcmp.eq.s32.totalorder %v134, 1
    %vm173 = vcmp.eq.s32.totalorder %v137, 1
    %vm174 = vcmp.eq.s32.totalorder %v140, 1
    %vm175 = vcmp.eq.s32.totalorder %v143, 1
    %vm176 = vcmp.eq.s32.totalorder %v146, 1
    %vm177 = vcmp.eq.s32.totalorder %v149, 1
    %vm178 = vcmp.eq.s32.totalorder %v152, 1
    %vm179 = vcmp.eq.s32.totalorder %v155, 1
    %vm180 = vcmp.eq.s32.totalorder %v158, 1
    %vm181 = vcmp.eq.s32.totalorder %v161, 1
    %vm182 = vcmp.eq.s32.totalorder %v164, 1
    %vm183 = vcmp.eq.s32.totalorder %v167, 1
    %v184 = vsel %vm168, %v40, 0.0
    %v185 = vsel %vm169, %v41, 0.0
    %v186 = vsel %vm170, %v42, 0.0
    %v187 = vsel %vm171, %v43, 0.0
    %v188 = vsel %vm172, %v44, 0.0
    %v189 = vsel %vm173, %v45, 0.0
    %v190 = vsel %vm174, %v46, 0.0
    %v191 = vsel %vm175, %v47, 0.0
    %v192 = vsel %vm176, %v48, 0.0
    %v193 = vsel %vm177, %v49, 0.0
    %v194 = vsel %vm178, %v50, 0.0
    %v195 = vsel %vm179, %v51, 0.0
    %v196 = vsel %vm180, %v52, 0.0
    %v197 = vsel %vm181, %v53, 0.0
    %v198 = vsel %vm182, %v54, 0.0
    %v199 = vsel %vm183, %v55, 0.0
    %v200 = vld [vmem:[%s2] sm:$0xff]
    %v201 = vld [vmem:[%s2 + $0x8] sm:$0xff]
    %v202 = vld [vmem:[%s3] sm:$0x1]
    %v204 = vperm.slane %v202, 0
    %vm206 = vcmask 130048
    %v208 = vsel %vm206, %v184, 0
    %v211 = vsel %vm206, %v185, 0
    %v214 = vsel %vm206, %v186, 0
    %v217 = vsel %vm206, %v187, 0
    %v220 = vsel %vm206, %v188, 0
    %v223 = vsel %vm206, %v189, 0
    %v226 = vsel %vm206, %v190, 0
    %v229 = vsel %vm206, %v191, 0
    %v232 = vsel %vm206, %v192, 0
    %v235 = vsel %vm206, %v193, 0
    %v238 = vsel %vm206, %v194, 0
    %v241 = vsel %vm206, %v195, 0
    %v244 = vsel %vm206, %v196, 0
    %v247 = vsel %vm206, %v197, 0
    %v250 = vsel %vm206, %v198, 0
    %v253 = vsel %vm206, %v199, 0
    %255 = vmatpush.msra.mxu0 0.0
    %256 = vmatpush.msra.mxu0 0.0
    %257 = vmatpush.msra.mxu0 0.0
    %258 = vmatpush.msra.mxu0 0.0
    %259 = vmatpush.msra.mxu0 0.0
    %260 = vmatpush.msra.mxu0 0.0
    %261 = vmatpush.msra.mxu0 0.0
    %262 = vmatpush.msra.mxu0 0.0
    %263 = vmatpush.msra.mxu0 0.0
    %264 = vmatpush.msra.mxu0 0.0
    %265 = vmatpush.msra.mxu0 0.0
    %266 = vmatpush.msra.mxu0 0.0
    %267 = vmatpush.msra.mxu0 0.0
    %268 = vmatpush.msra.mxu0 0.0
    %269 = vmatpush.msra.mxu0 %v201
    %270 = vmatpush.msra.mxu0 %v200
    %271 = vmatmul.f32.gmra.mxu0 %v208
    %v272 = vpop.f32.mrf.mxu0
    %v273 = vadd.f32 %v204, %v272
    %274 = vmatmul.f32.gmra.mxu0 %v211
    %v275 = vpop.f32.mrf.mxu0
    %v276 = vadd.f32 %v204, %v275
    %277 = vmatmul.f32.gmra.mxu0 %v214
    %v278 = vpop.f32.mrf.mxu0
    %v279 = vadd.f32 %v204, %v278
    %280 = vmatmul.f32.gmra.mxu0 %v217
    %v281 = vpop.f32.mrf.mxu0
    %v282 = vadd.f32 %v204, %v281
    %283 = vmatmul.f32.gmra.mxu0 %v220
    %v284 = vpop.f32.mrf.mxu0
    %v285 = vadd.f32 %v204, %v284
    %286 = vmatmul.f32.gmra.mxu0 %v223
    %v287 = vpop.f32.mrf.mxu0
    %v288 = vadd.f32 %v204, %v287
    %289 = vmatmul.f32.gmra.mxu0 %v226
    %v290 = vpop.f32.mrf.mxu0
    %v291 = vadd.f32 %v204, %v290
    %292 = vmatmul.f32.gmra.mxu0 %v229
    %v293 = vpop.f32.mrf.mxu0
    %v294 = vadd.f32 %v204, %v293
    %295 = vmatmul.f32.gmra.mxu0 %v232
    %v296 = vpop.f32.mrf.mxu0
    %v297 = vadd.f32 %v204, %v296
    %298 = vmatmul.f32.gmra.mxu0 %v235
    %v299 = vpop.f32.mrf.mxu0
    %v300 = vadd.f32 %v204, %v299
    %301 = vmatmul.f32.gmra.mxu0 %v238
    %v302 = vpop.f32.mrf.mxu0
    %v303 = vadd.f32 %v204, %v302
    %304 = vmatmul.f32.gmra.mxu0 %v241
    %v305 = vpop.f32.mrf.mxu0
    %v306 = vadd.f32 %v204, %v305
    %307 = vmatmul.f32.gmra.mxu0 %v244
    %v308 = vpop.f32.mrf.mxu0
    %v309 = vadd.f32 %v204, %v308
    %310 = vmatmul.f32.gmra.mxu0 %v247
    %v311 = vpop.f32.mrf.mxu0
    %v312 = vadd.f32 %v204, %v311
    %313 = vmatmul.f32.gmra.mxu0 %v250
    %v314 = vpop.f32.mrf.mxu0
    %v315 = vadd.f32 %v204, %v314
    %316 = vmatmul.f32.gmra.mxu0 %v253
    %v317 = vpop.f32.mrf.mxu0
    %v318 = vadd.f32 %v204, %v317
    %319 = vdwg.mxu0
    %v320 = vmax.f32 %v273, 0.0
    %v321 = vmax.f32 %v276, 0.0
    %v322 = vmax.f32 %v279, 0.0
    %v323 = vmax.f32 %v282, 0.0
    %v324 = vmax.f32 %v285, 0.0
    %v325 = vmax.f32 %v288, 0.0
    %v326 = vmax.f32 %v291, 0.0
    %v327 = vmax.f32 %v294, 0.0
    %v328 = vmax.f32 %v297, 0.0
    %v329 = vmax.f32 %v300, 0.0
    %v330 = vmax.f32 %v303, 0.0
    %v331 = vmax.f32 %v306, 0.0
    %v332 = vmax.f32 %v309, 0.0
    %v333 = vmax.f32 %v312, 0.0
    %v334 = vmax.f32 %v315, 0.0
    %v335 = vmax.f32 %v318, 0.0
    %v336 = vld [vmem:[%s4] sm:$0xff]
    %v337 = vld [vmem:[%s4 + $0x8] sm:$0xff]
    %v338 = vld [vmem:[%s5] sm:$0x1]
    %v340 = vperm.slane %v338, 0
    %v343 = vsel %vm206, %v320, 0
    %v346 = vsel %vm206, %v321, 0
    %v349 = vsel %vm206, %v322, 0
    %v352 = vsel %vm206, %v323, 0
    %v355 = vsel %vm206, %v324, 0
    %v358 = vsel %vm206, %v325, 0
    %v361 = vsel %vm206, %v326, 0
    %v364 = vsel %vm206, %v327, 0
    %v367 = vsel %vm206, %v328, 0
    %v370 = vsel %vm206, %v329, 0
    %v373 = vsel %vm206, %v330, 0
    %v376 = vsel %vm206, %v331, 0
    %v379 = vsel %vm206, %v332, 0
    %v382 = vsel %vm206, %v333, 0
    %v385 = vsel %vm206, %v334, 0
    %v388 = vsel %vm206, %v335, 0
    %390 = vmatpush.msra.mxu0 0.0
    %391 = vmatpush.msra.mxu0 0.0
    %392 = vmatpush.msra.mxu0 0.0
    %393 = vmatpush.msra.mxu0 0.0
    %394 = vmatpush.msra.mxu0 0.0
    %395 = vmatpush.msra.mxu0 0.0
    %396 = vmatpush.msra.mxu0 0.0
    %397 = vmatpush.msra.mxu0 0.0
    %398 = vmatpush.msra.mxu0 0.0
    %399 = vmatpush.msra.mxu0 0.0
    %400 = vmatpush.msra.mxu0 0.0
    %401 = vmatpush.msra.mxu0 0.0
    %402 = vmatpush.msra.mxu0 0.0
    %403 = vmatpush.msra.mxu0 0.0
    %404 = vmatpush.msra.mxu0 %v337
    %405 = vmatpush.msra.mxu0 %v336
    %406 = vmatmul.f32.gmra.mxu0 %v343
    %v407 = vpop.f32.mrf.mxu0
    %v408 = vadd.f32 %v340, %v407
    %409 = vmatmul.f32.gmra.mxu0 %v346
    %v410 = vpop.f32.mrf.mxu0
    %v411 = vadd.f32 %v340, %v410
    %412 = vmatmul.f32.gmra.mxu0 %v349
    %v413 = vpop.f32.mrf.mxu0
    %v414 = vadd.f32 %v340, %v413
    %415 = vmatmul.f32.gmra.mxu0 %v352
    %v416 = vpop.f32.mrf.mxu0
    %v417 = vadd.f32 %v340, %v416
    %418 = vmatmul.f32.gmra.mxu0 %v355
    %v419 = vpop.f32.mrf.mxu0
    %v420 = vadd.f32 %v340, %v419
    %421 = vmatmul.f32.gmra.mxu0 %v358
    %v422 = vpop.f32.mrf.mxu0
    %v423 = vadd.f32 %v340, %v422
    %424 = vmatmul.f32.gmra.mxu0 %v361
    %v425 = vpop.f32.mrf.mxu0
    %v426 = vadd.f32 %v340, %v425
    %427 = vmatmul.f32.gmra.mxu0 %v364
    %v428 = vpop.f32.mrf.mxu0
    %v429 = vadd.f32 %v340, %v428
    %430 = vmatmul.f32.gmra.mxu0 %v367
    %v431 = vpop.f32.mrf.mxu0
    %v432 = vadd.f32 %v340, %v431
    %433 = vmatmul.f32.gmra.mxu0 %v370
    %v434 = vpop.f32.mrf.mxu0
    %v435 = vadd.f32 %v340, %v434
    %436 = vmatmul.f32.gmra.mxu0 %v373
    %v437 = vpop.f32.mrf.mxu0
    %v438 = vadd.f32 %v340, %v437
    %439 = vmatmul.f32.gmra.mxu0 %v376
    %v440 = vpop.f32.mrf.mxu0
    %v441 = vadd.f32 %v340, %v440
    %442 = vmatmul.f32.gmra.mxu0 %v379
    %v443 = vpop.f32.mrf.mxu0
    %v444 = vadd.f32 %v340, %v443
    %445 = vmatmul.f32.gmra.mxu0 %v382
    %v446 = vpop.f32.mrf.mxu0
    %v447 = vadd.f32 %v340, %v446
    %448 = vmatmul.f32.gmra.mxu0 %v385
    %v449 = vpop.f32.mrf.mxu0
    %v450 = vadd.f32 %v340, %v449
    %451 = vmatmul.f32.gmra.mxu0 %v388
    %v452 = vpop.f32.mrf.mxu0
    %v453 = vadd.f32 %v340, %v452
    %454 = vdwg.mxu0
    %v455 = vsel %vm168, %v408, -1e+09
    %v456 = vsel %vm169, %v411, -1e+09
    %v457 = vsel %vm170, %v414, -1e+09
    %v458 = vsel %vm171, %v417, -1e+09
    %v459 = vsel %vm172, %v420, -1e+09
    %v460 = vsel %vm173, %v423, -1e+09
    %v461 = vsel %vm174, %v426, -1e+09
    %v462 = vsel %vm175, %v429, -1e+09
    %v463 = vsel %vm176, %v432, -1e+09
    %v464 = vsel %vm177, %v435, -1e+09
    %v465 = vsel %vm178, %v438, -1e+09
    %v466 = vsel %vm179, %v441, -1e+09
    %v467 = vsel %vm180, %v444, -1e+09
    %v468 = vsel %vm181, %v447, -1e+09
    %v469 = vsel %vm182, %v450, -1e+09
    %v470 = vsel %vm183, %v453, -1e+09
    %vm471 = vcmask 261120
    %v472 = vsel %vm471, %v455, -inf
    %v473 = vrot.slane %v472, 4
    %v474 = vmax.f32 %v472, %v473
    %v475 = vrot.slane %v474, 2
    %v476 = vmax.f32 %v474, %v475
    %v477 = vrot.slane %v476, 1
    %v478 = vmax.f32 %v476, %v477
    %v479 = vsel %vm471, %v456, -inf
    %v480 = vrot.slane %v479, 4
    %v481 = vmax.f32 %v479, %v480
    %v482 = vrot.slane %v481, 2
    %v483 = vmax.f32 %v481, %v482
    %v484 = vrot.slane %v483, 1
    %v485 = vmax.f32 %v483, %v484
    %v486 = vsel %vm471, %v457, -inf
    %v487 = vrot.slane %v486, 4
    %v488 = vmax.f32 %v486, %v487
    %v489 = vrot.slane %v488, 2
    %v490 = vmax.f32 %v488, %v489
    %v491 = vrot.slane %v490, 1
    %v492 = vmax.f32 %v490, %v491
    %v493 = vsel %vm471, %v458, -inf
    %v494 = vrot.slane %v493, 4
    %v495 = vmax.f32 %v493, %v494
    %v496 = vrot.slane %v495, 2
    %v497 = vmax.f32 %v495, %v496
    %v498 = vrot.slane %v497, 1
    %v499 = vmax.f32 %v497, %v498
    %v500 = vsel %vm471, %v459, -inf
    %v501 = vrot.slane %v500, 4
    %v502 = vmax.f32 %v500, %v501
    %v503 = vrot.slane %v502, 2
    %v504 = vmax.f32 %v502, %v503
    %v505 = vrot.slane %v504, 1
    %v506 = vmax.f32 %v504, %v505
    %v507 = vsel %vm471, %v460, -inf
    %v508 = vrot.slane %v507, 4
    %v509 = vmax.f32 %v507, %v508
    %v510 = vrot.slane %v509, 2
    %v511 = vmax.f32 %v509, %v510
    %v512 = vrot.slane %v511, 1
    %v513 = vmax.f32 %v511, %v512
    %v514 = vsel %vm471, %v461, -inf
    %v515 = vrot.slane %v514, 4
    %v516 = vmax.f32 %v514, %v515
    %v517 = vrot.slane %v516, 2
    %v518 = vmax.f32 %v516, %v517
    %v519 = vrot.slane %v518, 1
    %v520 = vmax.f32 %v518, %v519
    %v521 = vsel %vm471, %v462, -inf
    %v522 = vrot.slane %v521, 4
    %v523 = vmax.f32 %v521, %v522
    %v524 = vrot.slane %v523, 2
    %v525 = vmax.f32 %v523, %v524
    %v526 = vrot.slane %v525, 1
    %v527 = vmax.f32 %v525, %v526
    %v528 = vsel %vm471, %v463, -inf
    %v529 = vrot.slane %v528, 4
    %v530 = vmax.f32 %v528, %v529
    %v531 = vrot.slane %v530, 2
    %v532 = vmax.f32 %v530, %v531
    %v533 = vrot.slane %v532, 1
    %v534 = vmax.f32 %v532, %v533
    %v535 = vsel %vm471, %v464, -inf
    %v536 = vrot.slane %v535, 4
    %v537 = vmax.f32 %v535, %v536
    %v538 = vrot.slane %v537, 2
    %v539 = vmax.f32 %v537, %v538
    %v540 = vrot.slane %v539, 1
    %v541 = vmax.f32 %v539, %v540
    %v542 = vsel %vm471, %v465, -inf
    %v543 = vrot.slane %v542, 4
    %v544 = vmax.f32 %v542, %v543
    %v545 = vrot.slane %v544, 2
    %v546 = vmax.f32 %v544, %v545
    %v547 = vrot.slane %v546, 1
    %v548 = vmax.f32 %v546, %v547
    %v549 = vsel %vm471, %v466, -inf
    %v550 = vrot.slane %v549, 4
    %v551 = vmax.f32 %v549, %v550
    %v552 = vrot.slane %v551, 2
    %v553 = vmax.f32 %v551, %v552
    %v554 = vrot.slane %v553, 1
    %v555 = vmax.f32 %v553, %v554
    %v556 = vsel %vm471, %v467, -inf
    %v557 = vrot.slane %v556, 4
    %v558 = vmax.f32 %v556, %v557
    %v559 = vrot.slane %v558, 2
    %v560 = vmax.f32 %v558, %v559
    %v561 = vrot.slane %v560, 1
    %v562 = vmax.f32 %v560, %v561
    %v563 = vsel %vm471, %v468, -inf
    %v564 = vrot.slane %v563, 4
    %v565 = vmax.f32 %v563, %v564
    %v566 = vrot.slane %v565, 2
    %v567 = vmax.f32 %v565, %v566
    %v568 = vrot.slane %v567, 1
    %v569 = vmax.f32 %v567, %v568
    %v570 = vsel %vm471, %v469, -inf
    %v571 = vrot.slane %v570, 4
    %v572 = vmax.f32 %v570, %v571
    %v573 = vrot.slane %v572, 2
    %v574 = vmax.f32 %v572, %v573
    %v575 = vrot.slane %v574, 1
    %v576 = vmax.f32 %v574, %v575
    %v577 = vsel %vm471, %v470, -inf
    %v578 = vrot.slane %v577, 4
    %v579 = vmax.f32 %v577, %v578
    %v580 = vrot.slane %v579, 2
    %v581 = vmax.f32 %v579, %v580
    %v582 = vrot.slane %v581, 1
    %v583 = vmax.f32 %v581, %v582
    %vm600 = vcmask 1041409
    %v601 = vsel %vm600, %v485, %v478
    %vm602 = vcmask 1042434
    %v603 = vsel %vm602, %v492, %v601
    %vm604 = vcmask 1043459
    %v605 = vsel %vm604, %v499, %v603
    %vm606 = vcmask 1044484
    %v607 = vsel %vm606, %v506, %v605
    %vm608 = vcmask 1045509
    %v609 = vsel %vm608, %v513, %v607
    %vm610 = vcmask 1046534
    %v611 = vsel %vm610, %v520, %v609
    %vm612 = vcmask 1047559
    %v613 = vsel %vm612, %v527, %v611
    %v614 = vsel %vm600, %v541, %v534
    %v615 = vsel %vm602, %v548, %v614
    %v616 = vsel %vm604, %v555, %v615
    %v617 = vsel %vm606, %v562, %v616
    %v618 = vsel %vm608, %v569, %v617
    %v619 = vsel %vm610, %v576, %v618
    %v620 = vsel %vm612, %v583, %v619
    %623 = vst.msk [vmem:[#allocation2] sm:$0xff] %vm471, %v613
    %624 = vst.msk [vmem:[#allocation2 + $0x8] sm:$0xff] %vm471, %v620
    // Predicated region
    $region26: #{tpu_custom_call.1} parent=1 // pred_check
      _
    $region27: #{tpu_custom_call.1} parent=1 // pred_check_branch
      %626 = sbr.rel (0) target = $region29
    $region28: #{tpu_custom_call.1} parent=1 // pred_region
      %628 = vsyncadd [#allocation3], 0
      %s629 = sshll.u32 [#allocation2], 4
      %s630 = int_to_ptr.vmem [resolvable:$true] %s629
      %s631 = sshll.u32 %s6, 4
      %s632 = int_to_ptr.hbm [resolvable:$true] %s631
      %637 = dma.vmem_to_hbm [thread:$0]  %s630, 256, %s632, [#allocation3], 128, 128, 8
    $region29: #{tpu_custom_call.1} parent=1 // pred_fallthru
      _
    // Predicated region
    $region30: #{tpu_custom_call.1} parent=1 // pred_check
      _
    $region31: #{tpu_custom_call.1} parent=1 // pred_check_branch
      %639 = sbr.rel (0) target = $region33
    $region32: #{tpu_custom_call.1} parent=1 // pred_region
      %641 = dma.done [#allocation3], 256
    $region33: #{tpu_custom_call.1} parent=1 // pred_fallthru
      _
    %642 = vsyncpa [#allocation3], 1

</llo_original>
